<compile_context>
chip_gen: v6e
topology: v6e:2x2x1
jax: 0.10.0
libtpu: 0.0.40
codegen_flags: <defaults>
</compile_context>

<pallas_src>
import functools

import jax
import jax.numpy as jnp
from jax.experimental import pallas as pl
from jax.experimental.pallas import tpu as pltpu


def _round_up(x: int, m: int) -> int:
    return ((x + m - 1) // m) * m


def _vmem_limit_bytes() -> int:
    """Generation-dependent VMEM limit: v5e/v6e have 128 MiB, v7x only 64 MiB."""
    try:
        kind = jax.devices()[0].device_kind.lower()
    except Exception:
        kind = ""
    if "v5" in kind or "v6" in kind:
        return 100 * 1024 * 1024
    return 48 * 1024 * 1024  # v7x and conservative default


def _choose_tiles(B: int, D_in: int, D_out: int):
    """Tile policy.

    Per-(i, j)-tile arithmetic intensity is tm*tn/(tm+tn) flops per HBM byte,
    so 512x512 -> ~256 and 1024x1024 -> ~512, clearing the v5e roofline and
    getting close to the v6e/v7x one.  (1024, 1024, 1024) bf16 tiles are only
    ~16-20 MiB with double buffering, which fits every generation (v7x: 64 MiB).
    """
    big = D_in >= 2048 and D_out >= 2048
    tn_pref = 1024 if big else 512
    tk_pref = 1024
    # Weight traffic is re-read Mp/tm times; grow tm first for weight-heavy /
    # large-batch layers to cut the dominant HBM term.
    tm_pref = 1024 if (big or B >= 2048) else 512

    tn = min(tn_pref, _round_up(D_out, 256))
    if D_out <= 128:  # D_out itself tiny: don't pad N to 256 just for MXU width
        tn = 128
    tk = min(tk_pref, _round_up(D_in, 256))
    tm = min(tm_pref, _round_up(B, 16))  # 16: bf16 packs two rows per sublane

    # v7x shards the "parallel" grid axes over 2 TensorCores; if the whole
    # problem collapses to a single (i, j) tile, split M so both cores work.
    if (
        _round_up(B, 16) <= tm
        and _round_up(D_out, 256) <= tn
        and tm >= 32
        and B > tm // 2
    ):
        tm //= 2  # still a multiple of 8 (tm was a multiple of 16)

    return tm, tn, tk


def mlp_kernel(x_ref, w_ref, b_ref, o_ref, acc_ref):
    k = pl.program_id(2)

    # Pure MXU work in the K loop (bf16 x bf16 -> f32).
    part = jnp.dot(x_ref[...], w_ref[...], preferred_element_type=jnp.float32)

    # First K step writes the accumulator directly (saves a full (tm, tn) f32
    # VMEM read-modify-write per output tile); later steps accumulate.
    @pl.when(k == 0)
    def _():
        acc_ref[...] = part

    @pl.when(k > 0)
    def _():
        acc_ref[...] += part

    # Epilogue (bias + ReLU + bf16 cast) only once, on the last K step.
    @pl.when(k == pl.num_programs(2) - 1)
    def _():
        o_ref[...] = jnp.maximum(acc_ref[...] + b_ref[...], 0.0).astype(o_ref.dtype)


@functools.partial(jax.jit, static_argnames=("d_out", "tm", "tn", "tk", "vmem_limit"))
def _mlp_forward_padded(x, wp, bp, *, d_out, tm, tn, tk, vmem_limit):
    """x: (B, D_in); wp: (Kp, Np) bf16 pre-padded weight; bp: (1, Np) f32 bias."""
    B, D_in = x.shape
    Kp, Np = wp.shape
    Mp = _round_up(B, tm)

    # Pad/cast activations only when needed (static-shape branch at trace time).
    if (Mp, Kp) == (B, D_in):
        xp = x.astype(jnp.bfloat16)
    else:
        xp = (
            jnp.zeros((Mp, Kp), jnp.bfloat16)
            .at[:B, :D_in]
            .set(x.astype(jnp.bfloat16))
        )

    grid = (Mp // tm, Np // tn, Kp // tk)

    cost = pl.CostEstimate(
        flops=2 * Mp * Kp * Np,
        transcendentals=0,
        bytes_accessed=(Mp * Kp + Kp * Np) * 2 + Np * 4 + Mp * Np * 2,
    )

    yp = pl.pallas_call(
        mlp_kernel,
        out_shape=jax.ShapeDtypeStruct((Mp, Np), jnp.bfloat16),  # bf16 writeback
        grid=grid,
        in_specs=[
            pl.BlockSpec((tm, tk), lambda i, j, k: (i, k)),  # x tile
            pl.BlockSpec((tk, tn), lambda i, j, k: (k, j)),  # W tile (streamed over K)
            pl.BlockSpec((1, tn), lambda i, j, k: (0, j)),   # bias slice per N tile
        ],
        out_specs=pl.BlockSpec((tm, tn), lambda i, j, k: (i, j)),
        scratch_shapes=[pltpu.VMEM((tm, tn), jnp.float32)],  # f32 accumulator
        compiler_params=pltpu.CompilerParams(
            dimension_semantics=("parallel", "parallel", "arbitrary"),
            vmem_limit_bytes=vmem_limit,
        ),
        cost_estimate=cost,
    )(xp, wp, bp)

    return yp[:B, :d_out]


def make_mlp(w, b):
    """Build the MLP forward from PyTorch-convention params.

    w: (D_out, D_in), b: (D_out,).  The weight transpose, bf16 cast and padding
    are done ONCE here (off the per-call hot path).  Returned forward(x)
    computes relu(x @ W^T + b) and emits bf16 (reduction accumulates in f32).
    """
    D_out, D_in = w.shape
    _, tn, tk = _choose_tiles(1, D_in, D_out)
    Kp, Np = _round_up(D_in, tk), _round_up(D_out, tn)

    w_t = jnp.asarray(w).T.astype(jnp.bfloat16)
    if (Kp, Np) != (D_in, D_out):
        w_t = jnp.zeros((Kp, Np), jnp.bfloat16).at[:D_in, :D_out].set(w_t)
    bp = jnp.asarray(b, jnp.float32).reshape(1, D_out)
    if Np != D_out:
        bp = jnp.zeros((1, Np), jnp.float32).at[:, :D_out].set(bp)

    vmem_limit = _vmem_limit_bytes()

    def forward(x):
        # tn/tk are baked into the padded weight; only tm depends on the batch.
        tm, _, _ = _choose_tiles(x.shape[0], D_in, D_out)
        return _mlp_forward_padded(
            x, w_t, bp, d_out=D_out, tm=tm, tn=tn, tk=tk, vmem_limit=vmem_limit
        )

    return forward


def init_linear_params(key, input_dim, output_dim):
    # Mimics torch.nn.Linear default init: U(-1/sqrt(fan_in), 1/sqrt(fan_in)).
    kw, kb = jax.random.split(key)
    bound = 1.0 / jnp.sqrt(float(input_dim))
    w = jax.random.uniform(kw, (output_dim, input_dim), jnp.float32, -bound, bound)
    b = jax.random.uniform(kb, (output_dim,), jnp.float32, -bound, bound)
    return w, b


if __name__ == "__main__":
    key = jax.random.PRNGKey(0)
    k_x, k_p = jax.random.split(key)

    batch, input_dim, output_dim = 8, 32, 16
    x = jax.random.normal(k_x, (batch, input_dim), jnp.float32)
    w, b = init_linear_params(k_p, input_dim, output_dim)

    mlp = make_mlp(w, b)  # weight prep (transpose/cast/pad) happens once, here
    y = mlp(x)
    jax.block_until_ready(y)

    # Reference with the same bf16 operand rounding the MXU path sees.
    xb = x.astype(jnp.bfloat16).astype(jnp.float32)
    wb = w.astype(jnp.bfloat16).astype(jnp.float32)
    y_ref = jnp.maximum(xb @ wb.T + b, 0.0)

    assert y.shape == (batch, output_dim)
    assert y.dtype == jnp.bfloat16
    err = float(jnp.max(jnp.abs(y.astype(jnp.float32) - y_ref)))
    assert err < 3e-2, err  # bf16 output rounding only; reduction is f32

    print("KERNEL_OK")
</pallas_src>

<mosaic_0001>
module attributes {stable_mosaic.version = 11 : i64} {
  func.func @mlp_kernel(%arg0: i32, %arg1: i32, %arg2: i32, %arg3: memref<16x256xbf16, #tpu.memory_space<vmem>>, %arg4: memref<256x128xbf16, #tpu.memory_space<vmem>>, %arg5: memref<1x128xf32, #tpu.memory_space<vmem>>, %arg6: memref<16x128xbf16, #tpu.memory_space<vmem>>, %arg7: memref<16x128xf32, #tpu.memory_space<vmem>>) attributes {dimension_semantics = [#tpu.dimension_semantics<parallel>, #tpu.dimension_semantics<parallel>, #tpu.dimension_semantics<arbitrary>], iteration_bounds = array<i64: 1, 1, 1>, scalar_prefetch = 0 : i64, scratch_operands = 1 : i64, tpu.core_type = #tpu.core_type<tc>, window_params = [{transform_indices = @transform_0, window_bounds = array<i64: 16, 256>}, {transform_indices = @transform_1, window_bounds = array<i64: 256, 128>}, {transform_indices = @transform_2, window_bounds = array<i64: 1, 128>}, {transform_indices = @transform_3, window_bounds = array<i64: 16, 128>}]} {
    %c0 = arith.constant 0 : index
    %c0_0 = arith.constant 0 : index
    %0 = vector.load %arg3[%c0, %c0_0] : memref<16x256xbf16, #tpu.memory_space<vmem>>, vector<16x256xbf16>
    %c0_1 = arith.constant 0 : index
    %c0_2 = arith.constant 0 : index
    %1 = vector.load %arg4[%c0_1, %c0_2] : memref<256x128xbf16, #tpu.memory_space<vmem>>, vector<256x128xbf16>
    %cst = arith.constant dense<0.000000e+00> : vector<16x128xf32>
    %2 = tpu.matmul %0, %1, %cst {dimension_numbers = #tpu.dot_dimension_numbers<[1], [0], [0], [1], [0, 0, 1, 1], [], []>} : vector<16x256xbf16>, vector<256x128xbf16>, vector<16x128xf32> -> vector<16x128xf32>
    %c0_i32 = arith.constant 0 : i32
    %3 = arith.cmpi eq, %arg2, %c0_i32 : i32
    %4 = arith.extui %3 : i1 to i32
    %c0_i32_3 = arith.constant 0 : i32
    %5 = arith.cmpi ne, %4, %c0_i32_3 : i32
    scf.if %5 {
      %c0_8 = arith.constant 0 : index
      %c0_9 = arith.constant 0 : index
      %12 = vector.load %arg7[%c0_8, %c0_9] : memref<16x128xf32, #tpu.memory_space<vmem>>, vector<16x128xf32>
      tpu.vector_store %arg7[%c0_8, %c0_9], %2 {strides = array<i32>} : memref<16x128xf32, #tpu.memory_space<vmem>>, vector<16x128xf32>,
    } else {
    }
    %c0_i32_4 = arith.constant 0 : i32
    %6 = arith.cmpi sgt, %arg2, %c0_i32_4 : i32
    %7 = arith.extui %6 : i1 to i32
    %c0_i32_5 = arith.constant 0 : i32
    %8 = arith.cmpi ne, %7, %c0_i32_5 : i32
    scf.if %8 {
      %c0_8 = arith.constant 0 : index
      %c0_9 = arith.constant 0 : index
      %12 = vector.load %arg7[%c0_8, %c0_9] : memref<16x128xf32, #tpu.memory_space<vmem>>, vector<16x128xf32>
      %13 = arith.addf %12, %2 : vector<16x128xf32>
      %c0_10 = arith.constant 0 : index
      %c0_11 = arith.constant 0 : index
      %14 = vector.load %arg7[%c0_10, %c0_11] : memref<16x128xf32, #tpu.memory_space<vmem>>, vector<16x128xf32>
      tpu.vector_store %arg7[%c0_10, %c0_11], %13 {strides = array<i32>} : memref<16x128xf32, #tpu.memory_space<vmem>>, vector<16x128xf32>,
    } else {
    }
    %c0_i32_6 = arith.constant 0 : i32
    %9 = arith.cmpi eq, %arg2, %c0_i32_6 : i32
    %10 = arith.extui %9 : i1 to i32
    %c0_i32_7 = arith.constant 0 : i32
    %11 = arith.cmpi ne, %10, %c0_i32_7 : i32
    scf.if %11 {
      %c0_8 = arith.constant 0 : index
      %c0_9 = arith.constant 0 : index
      %12 = vector.load %arg7[%c0_8, %c0_9] : memref<16x128xf32, #tpu.memory_space<vmem>>, vector<16x128xf32>
      %c0_10 = arith.constant 0 : index
      %c0_11 = arith.constant 0 : index
      %13 = vector.load %arg5[%c0_10, %c0_11] : memref<1x128xf32, #tpu.memory_space<vmem>>, vector<1x128xf32>
      %14 = vector.broadcast %13 : vector<1x128xf32> to vector<16x128xf32>
      %15 = arith.addf %12, %14 : vector<16x128xf32>
      %cst_12 = arith.constant 0.000000e+00 : f32
      %16 = vector.broadcast %cst_12 : f32 to vector<16x128xf32>
      %17 = arith.maximumf %15, %16 : vector<16x128xf32>
      %18 = arith.truncf %17 : vector<16x128xf32> to vector<16x128xbf16>
      %c0_13 = arith.constant 0 : index
      %c0_14 = arith.constant 0 : index
      %19 = vector.load %arg6[%c0_13, %c0_14] : memref<16x128xbf16, #tpu.memory_space<vmem>>, vector<16x128xbf16>
      tpu.vector_store %arg6[%c0_13, %c0_14], %18 {strides = array<i32>} : memref<16x128xbf16, #tpu.memory_space<vmem>>, vector<16x128xbf16>,
    } else {
    }
    return
  }
  func.func @transform_0(%arg0: i32, %arg1: i32, %arg2: i32) -> (i32, i32) {
    %c0_i32 = arith.constant 0 : i32
    return %arg0, %arg2 : i32, i32
  }
  func.func @transform_1(%arg0: i32, %arg1: i32, %arg2: i32) -> (i32, i32) {
    %c0_i32 = arith.constant 0 : i32
    return %arg2, %arg1 : i32, i32
  }
  func.func @transform_2(%arg0: i32, %arg1: i32, %arg2: i32) -> (i32, i32) {
    %c0_i32 = arith.constant 0 : i32
    %c0_i32_0 = arith.constant 0 : i32
    return %c0_i32, %arg1 : i32, i32
  }
  func.func @transform_3(%arg0: i32, %arg1: i32, %arg2: i32) -> (i32, i32) {
    %c0_i32 = arith.constant 0 : i32
    return %arg0, %arg1 : i32, i32
  }
}

</mosaic_0001>

<llo_original>
// kernel: _mlp_forward_padded.1
$region0: #{_mlp_forward_padded.1}
  #allocation0 [shape = 'u32[]', space=smem, size = 0x4, offset = 0x4, fixed_abs, tag = 'smem constant byte address 0x4 - core index']
  #allocation1 [shape = 'u32[144,128]{1,0:T(1,128)}', space=vmem, size = 0x12000, scoped, tag = 'internal scratch']
  #allocation2 [shape = 'f32[16,128]{1,0:T(8,128)}', space=vmem, size = 0x2000, scoped, tag = 'scratch operand']
  %s0 = inlined_call_operand.vmem [shape: bf16[16,256], index: 0, kind: input, shape index: {}]
  %s1 = inlined_call_operand.hbm [shape: bf16[256,128], index: 1, kind: input, shape index: {}]
  %s2 = inlined_call_operand.vmem [shape: f32[1,128], index: 2, kind: input, shape index: {}]
  %s3 = inlined_call_operand.vmem [shape: bf16[16,128], index: 3, kind: output, shape index: {}]
  %s4 = sld [smem:[#allocation0]]
  $region38: #{_mlp_forward_padded.1} parent=0
    _
  %s6 = ssub.s32 1, %s4
  %s7 = scalar_select 0, %s6, %s4
  $region1: #{_mlp_forward_padded.1} parent=0
    #allocation3 [shape = 'u8[65536]{0}', space=vmem, size = 0x10000, scoped, tag = 'input window, operand 1, single buffered']
    #allocation4 [shape = 's32[1]{0}', space=sflag, size = 0x4, scoped, tag = 'scoped memory for _mlp_forward_padded.1']
    %8 = vsyncpa [#allocation4], 0
    // Predicated region
    $region2: #{_mlp_forward_padded.1} parent=1 // pred_check
      _
    $region3: #{_mlp_forward_padded.1} parent=1 // pred_check_branch
      %10 = sbr.rel (0) target = $region5
    $region4: #{_mlp_forward_padded.1} parent=1 // pred_region
      _
    $region5: #{_mlp_forward_padded.1} parent=1 // pred_fallthru
      _
    // Predicated region
    $region6: #{_mlp_forward_padded.1} parent=1 // pred_check
      _
    $region7: #{_mlp_forward_padded.1} parent=1 // pred_check_branch
      %12 = sbr.rel (0) target = $region9
    $region8: #{_mlp_forward_padded.1} parent=1 // pred_region
      %s14 = ssub.s32 2048, 2048
      %15 = vsyncadd [#allocation4], %s14
      %s16 = sshll.u32 [#allocation3], 4
      %s17 = int_to_ptr.vmem [resolvable:$true] %s16
      %22 = dma.hbm_to_vmem [thread:$0]  %s1, 2048, %s17, [#allocation4], 64, 64, 4
    $region9: #{_mlp_forward_padded.1} parent=1 // pred_fallthru
      _
    // Predicated region
    $region10: #{_mlp_forward_padded.1} parent=1 // pred_check
      _
    $region11: #{_mlp_forward_padded.1} parent=1 // pred_check_branch
      %24 = sbr.rel (0) target = $region13
    $region12: #{_mlp_forward_padded.1} parent=1 // pred_region
      _
    $region13: #{_mlp_forward_padded.1} parent=1 // pred_fallthru
      _
    // Predicated region
    $region14: #{_mlp_forward_padded.1} parent=1 // pred_check
      _
    $region15: #{_mlp_forward_padded.1} parent=1 // pred_check_branch
      %26 = sbr.rel (0) target = $region17
    $region16: #{_mlp_forward_padded.1} parent=1 // pred_region
      %27 = dma.done [#allocation4], 2048
    $region17: #{_mlp_forward_padded.1} parent=1 // pred_fallthru
      _
    %v29 = vld [vmem:[%s0] sm:$0xff]
    %v30 = vld [vmem:[%s0 + $0x8] sm:$0xff]
    %v31 = vld [vmem:[#allocation3] sm:$0xf]
    %v32 = vld [vmem:[#allocation3 + $0x4] sm:$0xf]
    %v33 = vld [vmem:[#allocation3 + $0x8] sm:$0xf]
    %v34 = vld [vmem:[#allocation3 + $0xc] sm:$0xf]
    %v35 = vld [vmem:[#allocation3 + $0x10] sm:$0xf]
    %v36 = vld [vmem:[#allocation3 + $0x14] sm:$0xf]
    %v37 = vld [vmem:[#allocation3 + $0x18] sm:$0xf]
    %v38 = vld [vmem:[#allocation3 + $0x1c] sm:$0xf]
    %v39 = vld [vmem:[#allocation3 + $0x20] sm:$0xf]
    %v40 = vld [vmem:[#allocation3 + $0x24] sm:$0xf]
    %v41 = vld [vmem:[#allocation3 + $0x28] sm:$0xf]
    %v42 = vld [vmem:[#allocation3 + $0x2c] sm:$0xf]
    %v43 = vld [vmem:[#allocation3 + $0x30] sm:$0xf]
    %v44 = vld [vmem:[#allocation3 + $0x34] sm:$0xf]
    %v45 = vld [vmem:[#allocation3 + $0x38] sm:$0xf]
    %v46 = vld [vmem:[#allocation3 + $0x3c] sm:$0xf]
    %v47 = vld [vmem:[#allocation3 + $0x40] sm:$0xf]
    %v48 = vld [vmem:[#allocation3 + $0x44] sm:$0xf]
    %v49 = vld [vmem:[#allocation3 + $0x48] sm:$0xf]
    %v50 = vld [vmem:[#allocation3 + $0x4c] sm:$0xf]
    %v51 = vld [vmem:[#allocation3 + $0x50] sm:$0xf]
    %v52 = vld [vmem:[#allocation3 + $0x54] sm:$0xf]
    %v53 = vld [vmem:[#allocation3 + $0x58] sm:$0xf]
    %v54 = vld [vmem:[#allocation3 + $0x5c] sm:$0xf]
    %v55 = vld [vmem:[#allocation3 + $0x60] sm:$0xf]
    %v56 = vld [vmem:[#allocation3 + $0x64] sm:$0xf]
    %v57 = vld [vmem:[#allocation3 + $0x68] sm:$0xf]
    %v58 = vld [vmem:[#allocation3 + $0x6c] sm:$0xf]
    %v59 = vld [vmem:[#allocation3 + $0x70] sm:$0xf]
    %v60 = vld [vmem:[#allocation3 + $0x74] sm:$0xf]
    %v61 = vld [vmem:[#allocation3 + $0x78] sm:$0xf]
    %v62 = vld [vmem:[#allocation3 + $0x7c] sm:$0xf]
    %v65 = vunpack.c.l.b16 %v29
    %v66 = vunpack.c.h.b16 %v29
    %v67 = vunpack.c.l.b16 %v30
    %v68 = vunpack.c.h.b16 %v30
    %v69 = vpack.c.b16 %v67, %v65
    %v70 = vpack.c.b16 %v68, %v66
    %v105 = vunpack.c.l.b16 %v31
    %v106 = vunpack.c.l.b16 %v32
    %v107 = vunpack.c.l.b16 %v33
    %v108 = vunpack.c.l.b16 %v34
    %v109 = vunpack.c.l.b16 %v35
    %v110 = vunpack.c.l.b16 %v36
    %v111 = vunpack.c.l.b16 %v37
    %v112 = vunpack.c.l.b16 %v38
    %v113 = vunpack.c.l.b16 %v39
    %v114 = vunpack.c.l.b16 %v40
    %v115 = vunpack.c.l.b16 %v41
    %v116 = vunpack.c.l.b16 %v42
    %v117 = vunpack.c.l.b16 %v43
    %v118 = vunpack.c.l.b16 %v44
    %v119 = vunpack.c.l.b16 %v45
    %v120 = vunpack.c.l.b16 %v46
    %v121 = vunpack.c.l.b16 %v47
    %v122 = vunpack.c.l.b16 %v48
    %v123 = vunpack.c.l.b16 %v49
    %v124 = vunpack.c.l.b16 %v50
    %v125 = vunpack.c.l.b16 %v51
    %v126 = vunpack.c.l.b16 %v52
    %v127 = vunpack.c.l.b16 %v53
    %v128 = vunpack.c.l.b16 %v54
    %v129 = vunpack.c.l.b16 %v55
    %v130 = vunpack.c.l.b16 %v56
    %v131 = vunpack.c.l.b16 %v57
    %v132 = vunpack.c.l.b16 %v58
    %v133 = vunpack.c.l.b16 %v59
    %v134 = vunpack.c.l.b16 %v60
    %v135 = vunpack.c.l.b16 %v61
    %v136 = vunpack.c.l.b16 %v62
    %v137 = vpack.c.b16 %v106, %v105
    %v138 = vpack.c.b16 %v108, %v107
    %v139 = vpack.c.b16 %v110, %v109
    %v140 = vpack.c.b16 %v112, %v111
    %v141 = vpack.c.b16 %v114, %v113
    %v142 = vpack.c.b16 %v116, %v115
    %v143 = vpack.c.b16 %v118, %v117
    %v144 = vpack.c.b16 %v120, %v119
    %v145 = vpack.c.b16 %v122, %v121
    %v146 = vpack.c.b16 %v124, %v123
    %v147 = vpack.c.b16 %v126, %v125
    %v148 = vpack.c.b16 %v128, %v127
    %v149 = vpack.c.b16 %v130, %v129
    %v150 = vpack.c.b16 %v132, %v131
    %v151 = vpack.c.b16 %v134, %v133
    %v152 = vpack.c.b16 %v136, %v135
    %169 = vmatprep.subr.bf16.mxu0 0
    %170 = vmatpush1.bf16.msra.mxu0 %v144
    %171 = vmatprep.subr.bf16.mxu0 0
    %172 = vmatpush1.bf16.msra.mxu0 %v143
    %173 = vmatprep.subr.bf16.mxu0 0
    %174 = vmatpush1.bf16.msra.mxu0 %v142
    %175 = vmatprep.subr.bf16.mxu0 0
    %176 = vmatpush1.bf16.msra.mxu0 %v141
    %177 = vmatprep.subr.bf16.mxu0 0
    %178 = vmatpush1.bf16.msra.mxu0 %v140
    %179 = vmatprep.subr.bf16.mxu0 0
    %180 = vmatpush1.bf16.msra.mxu0 %v139
    %181 = vmatprep.subr.bf16.mxu0 0
    %182 = vmatpush1.bf16.msra.mxu0 %v138
    %183 = vmatprep.subr.bf16.mxu0 0
    %184 = vmatpush1.bf16.msra.mxu0 %v137
    %185 = vmatprep.subr.bf16.mxu0 0
    %186 = vmatpush2.bf16.msra.mxu0 %v152
    %187 = vmatprep.subr.bf16.mxu0 0
    %188 = vmatpush2.bf16.msra.mxu0 %v151
    %189 = vmatprep.subr.bf16.mxu0 0
    %190 = vmatpush2.bf16.msra.mxu0 %v150
    %191 = vmatprep.subr.bf16.mxu0 0
    %192 = vmatpush2.bf16.msra.mxu0 %v149
    %193 = vmatprep.subr.bf16.mxu0 0
    %194 = vmatpush2.bf16.msra.mxu0 %v148
    %195 = vmatprep.subr.bf16.mxu0 0
    %196 = vmatpush2.bf16.msra.mxu0 %v147
    %197 = vmatprep.subr.bf16.mxu0 0
    %198 = vmatpush2.bf16.msra.mxu0 %v146
    %199 = vmatprep.subr.bf16.mxu0 0
    %200 = vmatpush2.bf16.msra.mxu0 %v145
    %201 = vmatprep.mubr.bf16.mxu0 %v70
    %202 = vmatmul.mubr.bf16.gmra.mxu0 %v69
    %v203 = vpop.f32.mrf.mxu0
    %v204 = vadd.f32 0.0, %v203
    %v205 = vpop.f32.mrf.mxu0
    %v206 = vpop.f32.mrf.mxu0
    %v207 = vadd.f32 0.0, %v206
    %v208 = vpop.f32.mrf.mxu0
    %209 = vdwg.mxu0
    %p210 = scmp.eq.s32.totalorder 0, 0
    // Predicated region
    $region18: #{_mlp_forward_padded.1} parent=1 // pred_check
      %p211 = pneg %p210
    $region19: #{_mlp_forward_padded.1} parent=1 // pred_check_branch
      %213 = sbr.rel (%p211) target = $region21
    $region20: #{_mlp_forward_padded.1} parent=1 // pred_region
      %214 = vst [vmem:[#allocation2] sm:$0xff] %v204
      %215 = vst [vmem:[#allocation2 + $0x8] sm:$0xff] %v207
    $region21: #{_mlp_forward_padded.1} parent=1 // pred_fallthru
      _
    %p216 = scmp.gt.s32.totalorder 0, 0
    // Predicated region
    $region22: #{_mlp_forward_padded.1} parent=1 // pred_check
      %p217 = pneg %p216
    $region23: #{_mlp_forward_padded.1} parent=1 // pred_check_branch
      %219 = sbr.rel (%p217) target = $region25
    $region24: #{_mlp_forward_padded.1} parent=1 // pred_region
      %v220 = vld [vmem:[#allocation2] sm:$0xff]
      %v221 = vld [vmem:[#allocation2 + $0x8] sm:$0xff]
      %v222 = vadd.f32 %v220, %v204
      %v223 = vadd.f32 %v221, %v207
      %224 = vst [vmem:[#allocation2] sm:$0xff] %v222
      %225 = vst [vmem:[#allocation2 + $0x8] sm:$0xff] %v223
    $region25: #{_mlp_forward_padded.1} parent=1 // pred_fallthru
      _
    // Predicated region
    $region26: #{_mlp_forward_padded.1} parent=1 // pred_check
      %p226 = pneg %p210
    $region27: #{_mlp_forward_padded.1} parent=1 // pred_check_branch
      %228 = sbr.rel (%p226) target = $region29
    $region28: #{_mlp_forward_padded.1} parent=1 // pred_region
      %v229 = vld [vmem:[#allocation2] sm:$0xff]
      %v230 = vld [vmem:[#allocation2 + $0x8] sm:$0xff]
      %v231 = vld [vmem:[%s2] sm:$0x1]
      %v233 = vlaneseq
      %v234 = vshrl.u32 %v233, 7
      %v235 = vsub.s32 0, %v234
      %v236 = vrot.slane %v231, %v235
      %v238 = vadd.f32 %v229, %v236
      %v239 = vadd.f32 %v230, %v236
      %v240 = vmax.f32 %v238, 0.0
      %v241 = vmax.f32 %v239, 0.0
      %v242 = vpack.c.bf16 %v241, %v240
      %v244 = vunpack.c.l.b16 %v242
      %v245 = vunpack.c.h.b16 %v242
      %v246 = vpack.c.b16 %v244, %v244
      %v247 = vpack.c.b16 %v245, %v245
      %250 = vst [vmem:[%s3] sm:$0xf] %v246
      %251 = vst [vmem:[%s3 + $0x4] sm:$0xf] %v247
    $region29: #{_mlp_forward_padded.1} parent=1 // pred_fallthru
      _
    // Predicated region
    $region30: #{_mlp_forward_padded.1} parent=1 // pred_check
      _
    $region31: #{_mlp_forward_padded.1} parent=1 // pred_check_branch
      %253 = sbr.rel (0) target = $region33
    $region32: #{_mlp_forward_padded.1} parent=1 // pred_region
      _
    $region33: #{_mlp_forward_padded.1} parent=1 // pred_fallthru
      _
    // Predicated region
    $region34: #{_mlp_forward_padded.1} parent=1 // pred_check
      _
    $region35: #{_mlp_forward_padded.1} parent=1 // pred_check_branch
      %255 = sbr.rel (0) target = $region37
    $region36: #{_mlp_forward_padded.1} parent=1 // pred_region
      _
    $region37: #{_mlp_forward_padded.1} parent=1 // pred_fallthru
      _
    %256 = vsyncpa [#allocation4], 1

</llo_original>
